<compile_context>
chip_gen: v5e
topology: v5e:2x2
jax: 0.10.0
libtpu: 0.0.40
codegen_flags: <defaults>
</compile_context>

<pallas_src>
import math

import jax
import jax.numpy as jnp
import numpy as np
from jax.experimental import pallas as pl
from jax.experimental.pallas import tpu as pltpu

LANES = 128


def _make_mlp_kernel(n_layers):
    """Fused [Linear -> ReLU] * (n_layers-1) -> Linear over one batch tile."""

    def kernel(*refs):
        h_ref = refs[0]
        out_ref = refs[-1]
        wb_refs = refs[1:-1]                      # w0, b0, w1, b1, ...
        x = h_ref[...]
        for i in range(n_layers):                 # static Python loop -> fully unrolled
            w = wb_refs[2 * i][...]               # (d_in, d_out), pre-transposed in wrapper
            b = wb_refs[2 * i + 1][...]           # (1,    d_out)
            x = jnp.dot(x, w, preferred_element_type=jnp.float32) + b
            if i < n_layers - 1:
                x = jnp.maximum(x, 0.0)           # ReLU on hidden layers only
        out_ref[...] = x                          # lane-dense (block_b, out_pad) store

    return kernel


def state_decoder_forward(h, weights, biases, max_len, block_b=128):
    """Pallas forward of StateDecoderModel.

    h:       (B, H) float32
    weights: list of PyTorch-layout (out_i, in_i) float32 matrices
    biases:  list of (out_i,) float32 vectors
    returns: (max_len, B, n_symbols) float32
    """
    B, H = h.shape
    n_layers = len(weights)
    out_dim = weights[-1].shape[0]                # n_symbols * max_len
    n_symbols = out_dim // max_len
    out_pad = ((out_dim + LANES - 1) // LANES) * LANES

    # Batch tiling: shard large batches over a parallel grid axis (both TCs on v7x).
    bm = block_b if (B % block_b == 0) else B
    grid = (pl.cdiv(B, bm),)

    inputs = [h]
    in_specs = [pl.BlockSpec((bm, H), lambda i: (i, 0))]
    for li, (w, b) in enumerate(zip(weights, biases)):
        wt = w.T                                  # (in, out): hot path is x @ W
        bt = b.reshape(1, -1)
        if li == n_layers - 1 and out_pad != out_dim:
            wt = jnp.pad(wt, ((0, 0), (0, out_pad - out_dim)))
            bt = jnp.pad(bt, ((0, 0), (0, out_pad - out_dim)))
        inputs += [wt, bt]
        in_specs += [
            pl.BlockSpec(wt.shape, lambda i: (0, 0)),
            pl.BlockSpec(bt.shape, lambda i: (0, 0)),
        ]

    out = pl.pallas_call(
        _make_mlp_kernel(n_layers),
        out_shape=jax.ShapeDtypeStruct((B, out_pad), jnp.float32),
        grid=grid,
        in_specs=in_specs,
        out_specs=pl.BlockSpec((bm, out_pad), lambda i: (i, 0)),
        compiler_params=pltpu.CompilerParams(dimension_semantics=("parallel",)),
    )(*inputs)

    # Layout plumbing: drop lane padding, then view + transpose exactly like the PyTorch module.
    res = out[:, :out_dim].reshape(B, max_len, n_symbols)
    return jnp.transpose(res, (1, 0, 2))          # (max_len, B, n_symbols)


def ref_forward(h, weights, biases, max_len):
    """Pure-JAX reference mirroring the PyTorch StateDecoderModel.forward."""
    x = h
    n_layers = len(weights)
    for i, (w, b) in enumerate(zip(weights, biases)):
        x = x @ w.T + b
        if i < n_layers - 1:
            x = jnp.maximum(x, 0.0)
    B = h.shape[0]
    res = x.reshape(B, max_len, -1)
    return jnp.transpose(res, (1, 0, 2))


if __name__ == "__main__":
    B, H, S, L, NL = 2, 32, 10, 8, 3   # batch, hidden_size, n_symbols, max_len, n_layers

    key = jax.random.PRNGKey(0)
    in_dims = [H] * NL
    out_dims = [H] * (NL - 1) + [S * L]
    weights, biases = [], []
    for din, dout in zip(in_dims, out_dims):
        key, kw, kb = jax.random.split(key, 3)
        bound = 1.0 / math.sqrt(din)                       # PyTorch Linear default init
        weights.append(jax.random.uniform(kw, (dout, din), minval=-bound, maxval=bound,
                                          dtype=jnp.float32))
        biases.append(jax.random.uniform(kb, (dout,), minval=-bound, maxval=bound,
                                         dtype=jnp.float32))
    key, kh = jax.random.split(key)
    h = jax.random.normal(kh, (B, H), dtype=jnp.float32)

    fwd = jax.jit(state_decoder_forward, static_argnums=(3,))
    out = jax.block_until_ready(fwd(h, weights, biases, L))

    assert out.shape == (L, B, S) and out.dtype == jnp.float32
    assert bool(jnp.all(jnp.isfinite(out)))

    ref = ref_forward(h, weights, biases, L)
    assert np.allclose(np.asarray(out), np.asarray(ref), rtol=2e-2, atol=2e-2)

    print("KERNEL_OK")
</pallas_src>

<mosaic_0001>
module attributes {stable_mosaic.version = 11 : i64} {
  func.func @kernel(%arg0: i32, %arg1: memref<2x32xf32, #tpu.memory_space<vmem>>, %arg2: memref<32x32xf32, #tpu.memory_space<vmem>>, %arg3: memref<1x32xf32, #tpu.memory_space<vmem>>, %arg4: memref<32x32xf32, #tpu.memory_space<vmem>>, %arg5: memref<1x32xf32, #tpu.memory_space<vmem>>, %arg6: memref<32x128xf32, #tpu.memory_space<vmem>>, %arg7: memref<1x128xf32, #tpu.memory_space<vmem>>, %arg8: memref<2x128xf32, #tpu.memory_space<vmem>>) attributes {dimension_semantics = [#tpu.dimension_semantics<parallel>], iteration_bounds = array<i64: 1>, scalar_prefetch = 0 : i64, scratch_operands = 0 : i64, tpu.core_type = #tpu.core_type<tc>, window_params = [{transform_indices = @transform_0, window_bounds = array<i64: 2, 32>}, {pipeline_mode = #tpu.pipeline_mode<synchronous>, transform_indices = @transform_1, window_bounds = array<i64: 32, 32>}, {pipeline_mode = #tpu.pipeline_mode<synchronous>, transform_indices = @transform_2, window_bounds = array<i64: 1, 32>}, {pipeline_mode = #tpu.pipeline_mode<synchronous>, transform_indices = @transform_3, window_bounds = array<i64: 32, 32>}, {pipeline_mode = #tpu.pipeline_mode<synchronous>, transform_indices = @transform_4, window_bounds = array<i64: 1, 32>}, {pipeline_mode = #tpu.pipeline_mode<synchronous>, transform_indices = @transform_5, window_bounds = array<i64: 32, 128>}, {pipeline_mode = #tpu.pipeline_mode<synchronous>, transform_indices = @transform_6, window_bounds = array<i64: 1, 128>}, {transform_indices = @transform_7, window_bounds = array<i64: 2, 128>}]} {
    %c0 = arith.constant 0 : index
    %c0_0 = arith.constant 0 : index
    %0 = vector.load %arg1[%c0, %c0_0] : memref<2x32xf32, #tpu.memory_space<vmem>>, vector<2x32xf32>
    %c0_1 = arith.constant 0 : index
    %c0_2 = arith.constant 0 : index
    %1 = vector.load %arg2[%c0_1, %c0_2] : memref<32x32xf32, #tpu.memory_space<vmem>>, vector<32x32xf32>
    %c0_3 = arith.constant 0 : index
    %c0_4 = arith.constant 0 : index
    %2 = vector.load %arg3[%c0_3, %c0_4] : memref<1x32xf32, #tpu.memory_space<vmem>>, vector<1x32xf32>
    %cst = arith.constant dense<0.000000e+00> : vector<2x32xf32>
    %3 = tpu.matmul %0, %1, %cst {dimension_numbers = #tpu.dot_dimension_numbers<[1], [0], [0], [1], [0, 0, 1, 1], [], []>} : vector<2x32xf32>, vector<32x32xf32>, vector<2x32xf32> -> vector<2x32xf32>
    %4 = vector.broadcast %2 : vector<1x32xf32> to vector<2x32xf32>
    %5 = arith.addf %3, %4 : vector<2x32xf32>
    %cst_5 = arith.constant 0.000000e+00 : f32
    %6 = vector.broadcast %cst_5 : f32 to vector<2x32xf32>
    %7 = arith.maximumf %5, %6 : vector<2x32xf32>
    %c0_6 = arith.constant 0 : index
    %c0_7 = arith.constant 0 : index
    %8 = vector.load %arg4[%c0_6, %c0_7] : memref<32x32xf32, #tpu.memory_space<vmem>>, vector<32x32xf32>
    %c0_8 = arith.constant 0 : index
    %c0_9 = arith.constant 0 : index
    %9 = vector.load %arg5[%c0_8, %c0_9] : memref<1x32xf32, #tpu.memory_space<vmem>>, vector<1x32xf32>
    %cst_10 = arith.constant dense<0.000000e+00> : vector<2x32xf32>
    %10 = tpu.matmul %7, %8, %cst_10 {dimension_numbers = #tpu.dot_dimension_numbers<[1], [0], [0], [1], [0, 0, 1, 1], [], []>} : vector<2x32xf32>, vector<32x32xf32>, vector<2x32xf32> -> vector<2x32xf32>
    %11 = vector.broadcast %9 : vector<1x32xf32> to vector<2x32xf32>
    %12 = arith.addf %10, %11 : vector<2x32xf32>
    %cst_11 = arith.constant 0.000000e+00 : f32
    %13 = vector.broadcast %cst_11 : f32 to vector<2x32xf32>
    %14 = arith.maximumf %12, %13 : vector<2x32xf32>
    %c0_12 = arith.constant 0 : index
    %c0_13 = arith.constant 0 : index
    %15 = vector.load %arg6[%c0_12, %c0_13] : memref<32x128xf32, #tpu.memory_space<vmem>>, vector<32x128xf32>
    %c0_14 = arith.constant 0 : index
    %c0_15 = arith.constant 0 : index
    %16 = vector.load %arg7[%c0_14, %c0_15] : memref<1x128xf32, #tpu.memory_space<vmem>>, vector<1x128xf32>
    %cst_16 = arith.constant dense<0.000000e+00> : vector<2x128xf32>
    %17 = tpu.matmul %14, %15, %cst_16 {dimension_numbers = #tpu.dot_dimension_numbers<[1], [0], [0], [1], [0, 0, 1, 1], [], []>} : vector<2x32xf32>, vector<32x128xf32>, vector<2x128xf32> -> vector<2x128xf32>
    %18 = vector.broadcast %16 : vector<1x128xf32> to vector<2x128xf32>
    %19 = arith.addf %17, %18 : vector<2x128xf32>
    %c0_17 = arith.constant 0 : index
    %c0_18 = arith.constant 0 : index
    %20 = vector.load %arg8[%c0_17, %c0_18] : memref<2x128xf32, #tpu.memory_space<vmem>>, vector<2x128xf32>
    tpu.vector_store %arg8[%c0_17, %c0_18], %19 {strides = array<i32>} : memref<2x128xf32, #tpu.memory_space<vmem>>, vector<2x128xf32>,
    return
  }
  func.func @transform_0(%arg0: i32) -> (i32, i32) {
    %c0_i32 = arith.constant 0 : i32
    %c0_i32_0 = arith.constant 0 : i32
    return %arg0, %c0_i32 : i32, i32
  }
  func.func @transform_1(%arg0: i32) -> (i32, i32) {
    %c0_i32 = arith.constant 0 : i32
    %c0_i32_0 = arith.constant 0 : i32
    %c0_i32_1 = arith.constant 0 : i32
    return %c0_i32, %c0_i32_0 : i32, i32
  }
  func.func @transform_2(%arg0: i32) -> (i32, i32) {
    %c0_i32 = arith.constant 0 : i32
    %c0_i32_0 = arith.constant 0 : i32
    %c0_i32_1 = arith.constant 0 : i32
    return %c0_i32, %c0_i32_0 : i32, i32
  }
  func.func @transform_3(%arg0: i32) -> (i32, i32) {
    %c0_i32 = arith.constant 0 : i32
    %c0_i32_0 = arith.constant 0 : i32
    %c0_i32_1 = arith.constant 0 : i32
    return %c0_i32, %c0_i32_0 : i32, i32
  }
  func.func @transform_4(%arg0: i32) -> (i32, i32) {
    %c0_i32 = arith.constant 0 : i32
    %c0_i32_0 = arith.constant 0 : i32
    %c0_i32_1 = arith.constant 0 : i32
    return %c0_i32, %c0_i32_0 : i32, i32
  }
  func.func @transform_5(%arg0: i32) -> (i32, i32) {
    %c0_i32 = arith.constant 0 : i32
    %c0_i32_0 = arith.constant 0 : i32
    %c0_i32_1 = arith.constant 0 : i32
    return %c0_i32, %c0_i32_0 : i32, i32
  }
  func.func @transform_6(%arg0: i32) -> (i32, i32) {
    %c0_i32 = arith.constant 0 : i32
    %c0_i32_0 = arith.constant 0 : i32
    %c0_i32_1 = arith.constant 0 : i32
    return %c0_i32, %c0_i32_0 : i32, i32
  }
  func.func @transform_7(%arg0: i32) -> (i32, i32) {
    %c0_i32 = arith.constant 0 : i32
    %c0_i32_0 = arith.constant 0 : i32
    return %arg0, %c0_i32 : i32, i32
  }
}

</mosaic_0001>

<llo_original>
// kernel: state_decoder_forward.1
$region0: #{state_decoder_forward.1}
  #allocation0 [shape = 'u32[]', space=smem, size = 0x4, offset = 0x4, fixed_abs, tag = 'smem constant byte address 0x4 - core index']
  #allocation1 [shape = 'u32[72,128]{1,0:T(1,128)}', space=vmem, size = 0x9000, scoped, tag = 'internal scratch']
  %s0 = inlined_call_operand.vmem [shape: f32[2,32], index: 0, kind: input, shape index: {}]
  %s1 = inlined_call_operand.vmem [shape: f32[32,32], index: 1, kind: input, shape index: {}]
  %s2 = inlined_call_operand.vmem [shape: f32[1,32], index: 2, kind: input, shape index: {}]
  %s3 = inlined_call_operand.vmem [shape: f32[32,32], index: 3, kind: input, shape index: {}]
  %s4 = inlined_call_operand.vmem [shape: f32[1,32], index: 4, kind: input, shape index: {}]
  %s5 = inlined_call_operand.vmem [shape: f32[32,128], index: 5, kind: input, shape index: {}]
  %s6 = inlined_call_operand.vmem [shape: f32[1,128], index: 6, kind: input, shape index: {}]
  %s7 = inlined_call_operand.vmem [shape: f32[2,128], index: 7, kind: output, shape index: {}]
  %s8 = sld [smem:[#allocation0]]
  $region38: #{state_decoder_forward.1} parent=0
    _
  %s10 = ssub.s32 1, %s8
  %s11 = scalar_select 0, %s10, %s8
  // Predicated region
  $region2: #{state_decoder_forward.1} parent=0 // pred_check
    _
  $region3: #{state_decoder_forward.1} parent=0 // pred_check_branch
    %13 = sbr.rel (0) target = $region5
  $region4: #{state_decoder_forward.1} parent=0 // pred_region
    _
  $region5: #{state_decoder_forward.1} parent=0 // pred_fallthru
    _
  // Predicated region
  $region6: #{state_decoder_forward.1} parent=0 // pred_check
    _
  $region7: #{state_decoder_forward.1} parent=0 // pred_check_branch
    %15 = sbr.rel (0) target = $region9
  $region8: #{state_decoder_forward.1} parent=0 // pred_region
    _
  $region9: #{state_decoder_forward.1} parent=0 // pred_fallthru
    _
  // Predicated region
  $region10: #{state_decoder_forward.1} parent=0 // pred_check
    _
  $region11: #{state_decoder_forward.1} parent=0 // pred_check_branch
    %17 = sbr.rel (0) target = $region13
  $region12: #{state_decoder_forward.1} parent=0 // pred_region
    _
  $region13: #{state_decoder_forward.1} parent=0 // pred_fallthru
    _
  // Predicated region
  $region14: #{state_decoder_forward.1} parent=0 // pred_check
    _
  $region15: #{state_decoder_forward.1} parent=0 // pred_check_branch
    %19 = sbr.rel (0) target = $region17
  $region16: #{state_decoder_forward.1} parent=0 // pred_region
    _
  $region17: #{state_decoder_forward.1} parent=0 // pred_fallthru
    _
  // Predicated region
  $region18: #{state_decoder_forward.1} parent=0 // pred_check
    _
  $region19: #{state_decoder_forward.1} parent=0 // pred_check_branch
    %21 = sbr.rel (0) target = $region21
  $region20: #{state_decoder_forward.1} parent=0 // pred_region
    _
  $region21: #{state_decoder_forward.1} parent=0 // pred_fallthru
    _
  // Predicated region
  $region22: #{state_decoder_forward.1} parent=0 // pred_check
    _
  $region23: #{state_decoder_forward.1} parent=0 // pred_check_branch
    %23 = sbr.rel (0) target = $region25
  $region24: #{state_decoder_forward.1} parent=0 // pred_region
    _
  $region25: #{state_decoder_forward.1} parent=0 // pred_fallthru
    _
  // Predicated region
  $region26: #{state_decoder_forward.1} parent=0 // pred_check
    _
  $region27: #{state_decoder_forward.1} parent=0 // pred_check_branch
    %25 = sbr.rel (0) target = $region29
  $region28: #{state_decoder_forward.1} parent=0 // pred_region
    _
  $region29: #{state_decoder_forward.1} parent=0 // pred_fallthru
    _
  %v26 = vld [vmem:[%s0] sm:$0x3]
  %v27 = vld [vmem:[%s1] sm:$0xff]
  %v28 = vld [vmem:[%s1 + $0x8] sm:$0xff]
  %v29 = vld [vmem:[%s1 + $0x10] sm:$0xff]
  %v30 = vld [vmem:[%s1 + $0x18] sm:$0xff]
  %v31 = vld [vmem:[%s2] sm:$0x1]
  %v33 = vperm.slane %v31, 0
  %vm35 = vcmask 261120
  %v37 = vsel %vm35, %v26, 0
  %39 = vmatpush.msra.mxu0 0.0
  %40 = vmatpush.msra.mxu0 0.0
  %41 = vmatpush.msra.mxu0 0.0
  %42 = vmatpush.msra.mxu0 0.0
  %43 = vmatpush.msra.mxu0 0.0
  %44 = vmatpush.msra.mxu0 0.0
  %45 = vmatpush.msra.mxu0 0.0
  %46 = vmatpush.msra.mxu0 0.0
  %47 = vmatpush.msra.mxu0 0.0
  %48 = vmatpush.msra.mxu0 0.0
  %49 = vmatpush.msra.mxu0 0.0
  %50 = vmatpush.msra.mxu0 0.0
  %51 = vmatpush.msra.mxu0 %v30
  %52 = vmatpush.msra.mxu0 %v29
  %53 = vmatpush.msra.mxu0 %v28
  %54 = vmatpush.msra.mxu0 %v27
  %55 = vmatmul.f32.gmra.mxu0 %v37
  %v56 = vpop.f32.mrf.mxu0
  %v57 = vadd.f32 %v33, %v56
  %58 = vdwg.mxu0
  %v59 = vmax.f32 %v57, 0.0
  %v60 = vld [vmem:[%s3] sm:$0xff]
  %v61 = vld [vmem:[%s3 + $0x8] sm:$0xff]
  %v62 = vld [vmem:[%s3 + $0x10] sm:$0xff]
  %v63 = vld [vmem:[%s3 + $0x18] sm:$0xff]
  %v64 = vld [vmem:[%s4] sm:$0x1]
  %v66 = vperm.slane %v64, 0
  %v69 = vsel %vm35, %v59, 0
  %71 = vmatpush.msra.mxu0 0.0
  %72 = vmatpush.msra.mxu0 0.0
  %73 = vmatpush.msra.mxu0 0.0
  %74 = vmatpush.msra.mxu0 0.0
  %75 = vmatpush.msra.mxu0 0.0
  %76 = vmatpush.msra.mxu0 0.0
  %77 = vmatpush.msra.mxu0 0.0
  %78 = vmatpush.msra.mxu0 0.0
  %79 = vmatpush.msra.mxu0 0.0
  %80 = vmatpush.msra.mxu0 0.0
  %81 = vmatpush.msra.mxu0 0.0
  %82 = vmatpush.msra.mxu0 0.0
  %83 = vmatpush.msra.mxu0 %v63
  %84 = vmatpush.msra.mxu0 %v62
  %85 = vmatpush.msra.mxu0 %v61
  %86 = vmatpush.msra.mxu0 %v60
  %87 = vmatmul.f32.gmra.mxu0 %v69
  %v88 = vpop.f32.mrf.mxu0
  %v89 = vadd.f32 %v66, %v88
  %90 = vdwg.mxu0
  %v91 = vmax.f32 %v89, 0.0
  %v92 = vld [vmem:[%s5] sm:$0xff]
  %v93 = vld [vmem:[%s5 + $0x8] sm:$0xff]
  %v94 = vld [vmem:[%s5 + $0x10] sm:$0xff]
  %v95 = vld [vmem:[%s5 + $0x18] sm:$0xff]
  %v96 = vld [vmem:[%s6] sm:$0x1]
  %v98 = vperm.slane %v96, 0
  %v101 = vsel %vm35, %v91, 0
  %103 = vmatpush.msra.mxu0 0.0
  %104 = vmatpush.msra.mxu0 0.0
  %105 = vmatpush.msra.mxu0 0.0
  %106 = vmatpush.msra.mxu0 0.0
  %107 = vmatpush.msra.mxu0 0.0
  %108 = vmatpush.msra.mxu0 0.0
  %109 = vmatpush.msra.mxu0 0.0
  %110 = vmatpush.msra.mxu0 0.0
  %111 = vmatpush.msra.mxu0 0.0
  %112 = vmatpush.msra.mxu0 0.0
  %113 = vmatpush.msra.mxu0 0.0
  %114 = vmatpush.msra.mxu0 0.0
  %115 = vmatpush.msra.mxu0 %v95
  %116 = vmatpush.msra.mxu0 %v94
  %117 = vmatpush.msra.mxu0 %v93
  %118 = vmatpush.msra.mxu0 %v92
  %119 = vmatmul.f32.gmra.mxu0 %v101
  %v120 = vpop.f32.mrf.mxu0
  %v121 = vadd.f32 %v98, %v120
  %122 = vdwg.mxu0
  %123 = vst [vmem:[%s7] sm:$0x3] %v121
  // Predicated region
  $region30: #{state_decoder_forward.1} parent=0 // pred_check
    _
  $region31: #{state_decoder_forward.1} parent=0 // pred_check_branch
    %125 = sbr.rel (0) target = $region33
  $region32: #{state_decoder_forward.1} parent=0 // pred_region
    _
  $region33: #{state_decoder_forward.1} parent=0 // pred_fallthru
    _
  // Predicated region
  $region34: #{state_decoder_forward.1} parent=0 // pred_check
    _
  $region35: #{state_decoder_forward.1} parent=0 // pred_check_branch
    %127 = sbr.rel (0) target = $region37
  $region36: #{state_decoder_forward.1} parent=0 // pred_region
    _
  $region37: #{state_decoder_forward.1} parent=0 // pred_fallthru
    _

</llo_original>
